<compile_context>
chip_gen: v7x
topology: tpu7x:2x2x1
jax: 0.10.0
libtpu: 0.0.40
codegen_flags: <defaults>
</compile_context>

<pallas_src>
import numpy as np
import jax
import jax.numpy as jnp
from jax.experimental import pallas as pl
from jax.experimental.pallas import tpu as pltpu


def _downsample_kernel(x_ref, q_ref, w_ref, o_ref):
    # x_ref: (Cin,  tG, 2RW)   VMEM  - R row-pairs packed on the lane axis
    # q_ref: (2RW, R*W2)       VMEM  - constant block-diag 2x2 avg-pool matrix
    # w_ref: (Cout, Cin)       SMEM  - 1x1 conv weight, read as scalars
    # o_ref: (Cout, tG, R*W2)  VMEM
    cin, tg, lin = x_ref.shape
    cout = o_ref.shape[0]
    q = q_ref[...]

    # --- 2x2 average pool: one fused MXU matmul over all channels ------------
    if tg == 1 or tg % 8 == 0:
        # Folding (Cin, tG) onto sublanes is free when tG % 8 == 0 (or tG == 1).
        x2 = x_ref[...].reshape(cin * tg, lin)
        pooled_all = jnp.dot(x2, q, preferred_element_type=jnp.float32)
        pooled = [pooled_all[ci * tg:(ci + 1) * tg, :] for ci in range(cin)]
    else:
        # Rare fallback (tiny, non-8-aligned row counts): per-channel matmuls.
        pooled = [
            jnp.dot(x_ref[ci], q, preferred_element_type=jnp.float32)
            for ci in range(cin)
        ]

    # --- 1x1 conv (no bias): unrolled scalar*plane FMAs, direct stores -------
    for co in range(cout):
        acc = w_ref[co, 0] * pooled[0]
        for ci in range(1, cin):
            acc = acc + w_ref[co, ci] * pooled[ci]
        o_ref[co] = acc.astype(o_ref.dtype)


def _pool_matrix(W: int, R: int, dtype) -> jax.Array:
    """Block-diagonal (2*R*W, R*W2) matrix: 2x2 average pool over packed rows.

    Packed input row = R row-pairs, each row-pair = two adjacent image rows of
    width W. Output column r*W2 + j averages the 2x2 window (rows 2g+2r, 2g+2r+1,
    cols 2j, 2j+1)."""
    W2 = W // 2
    q = np.zeros((2 * R * W, R * W2), np.float32)
    for r in range(R):
        ro = r * 2 * W
        co = r * W2
        for j in range(W2):
            q[ro + 2 * j, co + j] = 0.25
            q[ro + 2 * j + 1, co + j] = 0.25
            q[ro + W + 2 * j, co + j] = 0.25
            q[ro + W + 2 * j + 1, co + j] = 0.25
    return jnp.asarray(q, dtype=dtype)


def _pick_row_pack(H2: int, W2: int) -> int:
    """Smallest divisor R of H2 with R*W2 >= 128 (lane-dense output); else H2."""
    for r in range(1, H2 + 1):
        if H2 % r == 0 and r * W2 >= 128:
            return r
    return H2


def _pick_tile_rows(G: int, N: int, Cin: int, Cout: int, LIN: int, LOUT: int,
                    itemsize: int, budget_bytes: int = 16 << 20) -> int:
    """Largest row tile whose FULL VMEM footprint (in+out double buffers, pool
    matrix, intermediates) stays under budget; prefers >=2 grid steps if N==1."""
    lin_p = -(-LIN // 128) * 128
    lout_p = -(-LOUT // 128) * 128

    def est(t: int) -> int:
        tpad = -(-t // 8) * 8
        in_blk = Cin * tpad * lin_p * itemsize
        out_blk = Cout * tpad * lout_p * itemsize
        q_blk = lin_p * lout_p * itemsize
        inter = (Cin + 1) * tpad * lout_p * 4  # pooled planes + conv acc (f32)
        return 2 * in_blk + 2 * out_blk + 2 * q_blk + inter

    cands = [d for d in range(8, G + 1, 8) if G % d == 0]
    if not cands:
        cands = [G]
    if N == 1:
        # v7x megacore: make sure both TensorCores get grid steps when possible.
        split = [d for d in cands if G // d >= 2]
        if split:
            cands = split
    fitting = [d for d in cands if est(d) <= budget_bytes]
    return max(fitting) if fitting else min(cands)


def downsample(x_nchw: jax.Array, w_oc_ic: jax.Array) -> jax.Array:
    """MPRNet DownSample forward.

    x_nchw:  (N, Cin, H, W) with even H, W (f32 or bf16).
    w_oc_ic: (Cout, Cin) -- PyTorch Conv2d weight (Cout, Cin, 1, 1) squeezed.
    Returns  (N, Cout, H//2, W//2), NCHW, same dtype as x.
    """
    N, Cin, H, W = x_nchw.shape
    Cout, Cin_w = w_oc_ic.shape
    assert Cin_w == Cin
    # TODO(synk): odd H/W would need true bilinear edge weights; MPRNet uses even sizes.
    assert H % 2 == 0 and W % 2 == 0, "DownSample kernel requires even H and W"
    H2, W2 = H // 2, W // 2

    R = _pick_row_pack(H2, W2)          # row-pairs packed per lane row
    G = H2 // R                         # packed-row count
    LIN = 2 * R * W                     # packed input row length (lanes)
    LOUT = R * W2                       # packed output row length (lanes)

    x2 = x_nchw.reshape(N, Cin, G, LIN)               # free contiguous reshape
    q = _pool_matrix(W, R, x_nchw.dtype)              # (LIN, LOUT)
    w = w_oc_ic.astype(jnp.float32)

    tG = _pick_tile_rows(G, N, Cin, Cout, LIN, LOUT, x_nchw.dtype.itemsize)
    grid = (N, G // tG)

    out = pl.pallas_call(
        _downsample_kernel,
        out_shape=jax.ShapeDtypeStruct((N, Cout, G, LOUT), x_nchw.dtype),
        grid=grid,
        in_specs=[
            pl.BlockSpec((None, Cin, tG, LIN), lambda n, g: (n, 0, g, 0)),
            pl.BlockSpec((LIN, LOUT), lambda n, g: (0, 0)),     # resident pool matrix
            pl.BlockSpec(memory_space=pltpu.MemorySpace.SMEM),  # tiny conv weight
        ],
        out_specs=pl.BlockSpec((None, Cout, tG, LOUT), lambda n, g: (n, 0, g, 0)),
        compiler_params=pltpu.CompilerParams(
            dimension_semantics=("parallel", "parallel"),
            vmem_limit_bytes=48 * 1024 * 1024,   # safe on v7x (64 MiB phys) and v5e/v6e
        ),
    )(x2, q, w)

    return out.reshape(N, Cout, H2, W2)               # free contiguous reshape


def downsample_ref(x_nchw: jax.Array, w_oc_ic: jax.Array) -> jax.Array:
    """Pure-JAX reference: 2x2 avg pool + 1x1 conv (no bias)."""
    N, C, H, W = x_nchw.shape
    pooled = x_nchw.reshape(N, C, H // 2, 2, W // 2, 2).mean(axis=(3, 5))
    return jnp.einsum("oc,nchw->nohw", w_oc_ic, pooled)


if __name__ == "__main__":
    # Module config: in_channels=4, s_factor=4 -> out_channels=8.
    in_channels, s_factor = 4, 4
    N, H, W = 2, 16, 16

    key = jax.random.PRNGKey(0)
    kx, kw = jax.random.split(key)
    x = jax.random.normal(kx, (N, in_channels, H, W), dtype=jnp.float32)
    # PyTorch Conv2d weight (Cout, Cin, 1, 1) squeezed to (Cout, Cin).
    w = 0.1 * jax.random.normal(
        kw, (in_channels + s_factor, in_channels), dtype=jnp.float32)

    y = jax.block_until_ready(downsample(x, w))
    y_ref = downsample_ref(x, w)

    assert y.shape == (N, in_channels + s_factor, H // 2, W // 2), y.shape
    err = float(jnp.max(jnp.abs(y - y_ref)))
    assert jnp.allclose(y, y_ref, atol=1e-4, rtol=1e-4), err

    print("KERNEL_OK")
</pallas_src>

<mosaic_0001>
module attributes {stable_mosaic.version = 11 : i64} {
  func.func @_downsample_kernel(%arg0: i32, %arg1: i32, %arg2: memref<1x4x1x256xf32, #tpu.memory_space<vmem>>, %arg3: memref<256x64xf32, #tpu.memory_space<vmem>>, %arg4: memref<8x4xf32, #tpu.memory_space<smem>>, %arg5: memref<1x8x1x64xf32, #tpu.memory_space<vmem>>) attributes {dimension_semantics = [#tpu.dimension_semantics<parallel>, #tpu.dimension_semantics<parallel>], iteration_bounds = array<i64: 2, 1>, scalar_prefetch = 0 : i64, scratch_operands = 0 : i64, tpu.core_type = #tpu.core_type<tc>, window_params = [{transform_indices = @transform_0, window_bounds = array<i64: 1, 4, 1, 256>}, {pipeline_mode = #tpu.pipeline_mode<synchronous>, transform_indices = @transform_1, window_bounds = array<i64: 256, 64>}, {transform_indices = @transform_2, window_bounds = array<i64: 8, 4>}, {transform_indices = @transform_3, window_bounds = array<i64: 1, 8, 1, 64>}]} {
    %c0 = arith.constant 0 : index
    %c0_0 = arith.constant 0 : index
    %0 = vector.load %arg3[%c0, %c0_0] : memref<256x64xf32, #tpu.memory_space<vmem>>, vector<256x64xf32>
    %c0_1 = arith.constant 0 : index
    %c0_2 = arith.constant 0 : index
    %c0_3 = arith.constant 0 : index
    %c0_4 = arith.constant 0 : index
    %1 = vector.load %arg2[%c0_1, %c0_2, %c0_3, %c0_4] : memref<1x4x1x256xf32, #tpu.memory_space<vmem>>, vector<1x4x1x256xf32>
    %2 = vector.shape_cast %1 : vector<1x4x1x256xf32> to vector<4x1x256xf32>
    %3 = vector.shape_cast %2 : vector<4x1x256xf32> to vector<4x256xf32>
    %cst = arith.constant dense<0.000000e+00> : vector<4x64xf32>
    %4 = tpu.matmul %3, %0, %cst {dimension_numbers = #tpu.dot_dimension_numbers<[1], [0], [0], [1], [0, 0, 1, 1], [], []>} : vector<4x256xf32>, vector<256x64xf32>, vector<4x64xf32> -> vector<4x64xf32>
    %5 = vector.extract_strided_slice %4 {offsets = [0, 0], sizes = [1, 64], strides = [1, 1]} : vector<4x64xf32> to vector<1x64xf32>
    %6 = vector.extract_strided_slice %4 {offsets = [1, 0], sizes = [1, 64], strides = [1, 1]} : vector<4x64xf32> to vector<1x64xf32>
    %7 = vector.extract_strided_slice %4 {offsets = [2, 0], sizes = [1, 64], strides = [1, 1]} : vector<4x64xf32> to vector<1x64xf32>
    %8 = vector.extract_strided_slice %4 {offsets = [3, 0], sizes = [1, 64], strides = [1, 1]} : vector<4x64xf32> to vector<1x64xf32>
    %c0_5 = arith.constant 0 : index
    %c0_6 = arith.constant 0 : index
    %9 = memref.load %arg4[%c0_5, %c0_6] : memref<8x4xf32, #tpu.memory_space<smem>>
    %10 = vector.broadcast %9 : f32 to vector<1x64xf32>
    %11 = arith.mulf %10, %5 : vector<1x64xf32>
    %c0_7 = arith.constant 0 : index
    %c1 = arith.constant 1 : index
    %12 = memref.load %arg4[%c0_7, %c1] : memref<8x4xf32, #tpu.memory_space<smem>>
    %13 = vector.broadcast %12 : f32 to vector<1x64xf32>
    %14 = arith.mulf %13, %6 : vector<1x64xf32>
    %15 = arith.addf %11, %14 : vector<1x64xf32>
    %c0_8 = arith.constant 0 : index
    %c2 = arith.constant 2 : index
    %16 = memref.load %arg4[%c0_8, %c2] : memref<8x4xf32, #tpu.memory_space<smem>>
    %17 = vector.broadcast %16 : f32 to vector<1x64xf32>
    %18 = arith.mulf %17, %7 : vector<1x64xf32>
    %19 = arith.addf %15, %18 : vector<1x64xf32>
    %c0_9 = arith.constant 0 : index
    %c3 = arith.constant 3 : index
    %20 = memref.load %arg4[%c0_9, %c3] : memref<8x4xf32, #tpu.memory_space<smem>>
    %21 = vector.broadcast %20 : f32 to vector<1x64xf32>
    %22 = arith.mulf %21, %8 : vector<1x64xf32>
    %23 = arith.addf %19, %22 : vector<1x64xf32>
    %c0_10 = arith.constant 0 : index
    %c0_11 = arith.constant 0 : index
    %c0_12 = arith.constant 0 : index
    %c0_13 = arith.constant 0 : index
    %24 = vector.load %arg5[%c0_10, %c0_11, %c0_12, %c0_13] : memref<1x8x1x64xf32, #tpu.memory_space<vmem>>, vector<1x1x1x64xf32>
    %25 = vector.shape_cast %24 : vector<1x1x1x64xf32> to vector<1x64xf32>
    %26 = vector.shape_cast %23 : vector<1x64xf32> to vector<1x1x1x64xf32>
    tpu.vector_store %arg5[%c0_10, %c0_11, %c0_12, %c0_13], %26 {strides = array<i32>} : memref<1x8x1x64xf32, #tpu.memory_space<vmem>>, vector<1x1x1x64xf32>,
    %c1_14 = arith.constant 1 : index
    %c0_15 = arith.constant 0 : index
    %27 = memref.load %arg4[%c1_14, %c0_15] : memref<8x4xf32, #tpu.memory_space<smem>>
    %28 = vector.broadcast %27 : f32 to vector<1x64xf32>
    %29 = arith.mulf %28, %5 : vector<1x64xf32>
    %c1_16 = arith.constant 1 : index
    %c1_17 = arith.constant 1 : index
    %30 = memref.load %arg4[%c1_16, %c1_17] : memref<8x4xf32, #tpu.memory_space<smem>>
    %31 = vector.broadcast %30 : f32 to vector<1x64xf32>
    %32 = arith.mulf %31, %6 : vector<1x64xf32>
    %33 = arith.addf %29, %32 : vector<1x64xf32>
    %c1_18 = arith.constant 1 : index
    %c2_19 = arith.constant 2 : index
    %34 = memref.load %arg4[%c1_18, %c2_19] : memref<8x4xf32, #tpu.memory_space<smem>>
    %35 = vector.broadcast %34 : f32 to vector<1x64xf32>
    %36 = arith.mulf %35, %7 : vector<1x64xf32>
    %37 = arith.addf %33, %36 : vector<1x64xf32>
    %c1_20 = arith.constant 1 : index
    %c3_21 = arith.constant 3 : index
    %38 = memref.load %arg4[%c1_20, %c3_21] : memref<8x4xf32, #tpu.memory_space<smem>>
    %39 = vector.broadcast %38 : f32 to vector<1x64xf32>
    %40 = arith.mulf %39, %8 : vector<1x64xf32>
    %41 = arith.addf %37, %40 : vector<1x64xf32>
    %c0_22 = arith.constant 0 : index
    %c1_23 = arith.constant 1 : index
    %c0_24 = arith.constant 0 : index
    %c0_25 = arith.constant 0 : index
    %42 = vector.load %arg5[%c0_22, %c1_23, %c0_24, %c0_25] : memref<1x8x1x64xf32, #tpu.memory_space<vmem>>, vector<1x1x1x64xf32>
    %43 = vector.shape_cast %42 : vector<1x1x1x64xf32> to vector<1x64xf32>
    %44 = vector.shape_cast %41 : vector<1x64xf32> to vector<1x1x1x64xf32>
    tpu.vector_store %arg5[%c0_22, %c1_23, %c0_24, %c0_25], %44 {strides = array<i32>} : memref<1x8x1x64xf32, #tpu.memory_space<vmem>>, vector<1x1x1x64xf32>,
    %c2_26 = arith.constant 2 : index
    %c0_27 = arith.constant 0 : index
    %45 = memref.load %arg4[%c2_26, %c0_27] : memref<8x4xf32, #tpu.memory_space<smem>>
    %46 = vector.broadcast %45 : f32 to vector<1x64xf32>
    %47 = arith.mulf %46, %5 : vector<1x64xf32>
    %c2_28 = arith.constant 2 : index
    %c1_29 = arith.constant 1 : index
    %48 = memref.load %arg4[%c2_28, %c1_29] : memref<8x4xf32, #tpu.memory_space<smem>>
    %49 = vector.broadcast %48 : f32 to vector<1x64xf32>
    %50 = arith.mulf %49, %6 : vector<1x64xf32>
    %51 = arith.addf %47, %50 : vector<1x64xf32>
    %c2_30 = arith.constant 2 : index
    %c2_31 = arith.constant 2 : index
    %52 = memref.load %arg4[%c2_30, %c2_31] : memref<8x4xf32, #tpu.memory_space<smem>>
    %53 = vector.broadcast %52 : f32 to vector<1x64xf32>
    %54 = arith.mulf %53, %7 : vector<1x64xf32>
    %55 = arith.addf %51, %54 : vector<1x64xf32>
    %c2_32 = arith.constant 2 : index
    %c3_33 = arith.constant 3 : index
    %56 = memref.load %arg4[%c2_32, %c3_33] : memref<8x4xf32, #tpu.memory_space<smem>>
    %57 = vector.broadcast %56 : f32 to vector<1x64xf32>
    %58 = arith.mulf %57, %8 : vector<1x64xf32>
    %59 = arith.addf %55, %58 : vector<1x64xf32>
    %c0_34 = arith.constant 0 : index
    %c2_35 = arith.constant 2 : index
    %c0_36 = arith.constant 0 : index
    %c0_37 = arith.constant 0 : index
    %60 = vector.load %arg5[%c0_34, %c2_35, %c0_36, %c0_37] : memref<1x8x1x64xf32, #tpu.memory_space<vmem>>, vector<1x1x1x64xf32>
    %61 = vector.shape_cast %60 : vector<1x1x1x64xf32> to vector<1x64xf32>
    %62 = vector.shape_cast %59 : vector<1x64xf32> to vector<1x1x1x64xf32>
    tpu.vector_store %arg5[%c0_34, %c2_35, %c0_36, %c0_37], %62 {strides = array<i32>} : memref<1x8x1x64xf32, #tpu.memory_space<vmem>>, vector<1x1x1x64xf32>,
    %c3_38 = arith.constant 3 : index
    %c0_39 = arith.constant 0 : index
    %63 = memref.load %arg4[%c3_38, %c0_39] : memref<8x4xf32, #tpu.memory_space<smem>>
    %64 = vector.broadcast %63 : f32 to vector<1x64xf32>
    %65 = arith.mulf %64, %5 : vector<1x64xf32>
    %c3_40 = arith.constant 3 : index
    %c1_41 = arith.constant 1 : index
    %66 = memref.load %arg4[%c3_40, %c1_41] : memref<8x4xf32, #tpu.memory_space<smem>>
    %67 = vector.broadcast %66 : f32 to vector<1x64xf32>
    %68 = arith.mulf %67, %6 : vector<1x64xf32>
    %69 = arith.addf %65, %68 : vector<1x64xf32>
    %c3_42 = arith.constant 3 : index
    %c2_43 = arith.constant 2 : index
    %70 = memref.load %arg4[%c3_42, %c2_43] : memref<8x4xf32, #tpu.memory_space<smem>>
    %71 = vector.broadcast %70 : f32 to vector<1x64xf32>
    %72 = arith.mulf %71, %7 : vector<1x64xf32>
    %73 = arith.addf %69, %72 : vector<1x64xf32>
    %c3_44 = arith.constant 3 : index
    %c3_45 = arith.constant 3 : index
    %74 = memref.load %arg4[%c3_44, %c3_45] : memref<8x4xf32, #tpu.memory_space<smem>>
    %75 = vector.broadcast %74 : f32 to vector<1x64xf32>
    %76 = arith.mulf %75, %8 : vector<1x64xf32>
    %77 = arith.addf %73, %76 : vector<1x64xf32>
    %c0_46 = arith.constant 0 : index
    %c3_47 = arith.constant 3 : index
    %c0_48 = arith.constant 0 : index
    %c0_49 = arith.constant 0 : index
    %78 = vector.load %arg5[%c0_46, %c3_47, %c0_48, %c0_49] : memref<1x8x1x64xf32, #tpu.memory_space<vmem>>, vector<1x1x1x64xf32>
    %79 = vector.shape_cast %78 : vector<1x1x1x64xf32> to vector<1x64xf32>
    %80 = vector.shape_cast %77 : vector<1x64xf32> to vector<1x1x1x64xf32>
    tpu.vector_store %arg5[%c0_46, %c3_47, %c0_48, %c0_49], %80 {strides = array<i32>} : memref<1x8x1x64xf32, #tpu.memory_space<vmem>>, vector<1x1x1x64xf32>,
    %c4 = arith.constant 4 : index
    %c0_50 = arith.constant 0 : index
    %81 = memref.load %arg4[%c4, %c0_50] : memref<8x4xf32, #tpu.memory_space<smem>>
    %82 = vector.broadcast %81 : f32 to vector<1x64xf32>
    %83 = arith.mulf %82, %5 : vector<1x64xf32>
    %c4_51 = arith.constant 4 : index
    %c1_52 = arith.constant 1 : index
    %84 = memref.load %arg4[%c4_51, %c1_52] : memref<8x4xf32, #tpu.memory_space<smem>>
    %85 = vector.broadcast %84 : f32 to vector<1x64xf32>
    %86 = arith.mulf %85, %6 : vector<1x64xf32>
    %87 = arith.addf %83, %86 : vector<1x64xf32>
    %c4_53 = arith.constant 4 : index
    %c2_54 = arith.constant 2 : index
    %88 = memref.load %arg4[%c4_53, %c2_54] : memref<8x4xf32, #tpu.memory_space<smem>>
    %89 = vector.broadcast %88 : f32 to vector<1x64xf32>
    %90 = arith.mulf %89, %7 : vector<1x64xf32>
    %91 = arith.addf %87, %90 : vector<1x64xf32>
    %c4_55 = arith.constant 4 : index
    %c3_56 = arith.constant 3 : index
    %92 = memref.load %arg4[%c4_55, %c3_56] : memref<8x4xf32, #tpu.memory_space<smem>>
    %93 = vector.broadcast %92 : f32 to vector<1x64xf32>
    %94 = arith.mulf %93, %8 : vector<1x64xf32>
    %95 = arith.addf %91, %94 : vector<1x64xf32>
    %c0_57 = arith.constant 0 : index
    %c4_58 = arith.constant 4 : index
    %c0_59 = arith.constant 0 : index
    %c0_60 = arith.constant 0 : index
    %96 = vector.load %arg5[%c0_57, %c4_58, %c0_59, %c0_60] : memref<1x8x1x64xf32, #tpu.memory_space<vmem>>, vector<1x1x1x64xf32>
    %97 = vector.shape_cast %96 : vector<1x1x1x64xf32> to vector<1x64xf32>
    %98 = vector.shape_cast %95 : vector<1x64xf32> to vector<1x1x1x64xf32>
    tpu.vector_store %arg5[%c0_57, %c4_58, %c0_59, %c0_60], %98 {strides = array<i32>} : memref<1x8x1x64xf32, #tpu.memory_space<vmem>>, vector<1x1x1x64xf32>,
    %c5 = arith.constant 5 : index
    %c0_61 = arith.constant 0 : index
    %99 = memref.load %arg4[%c5, %c0_61] : memref<8x4xf32, #tpu.memory_space<smem>>
    %100 = vector.broadcast %99 : f32 to vector<1x64xf32>
    %101 = arith.mulf %100, %5 : vector<1x64xf32>
    %c5_62 = arith.constant 5 : index
    %c1_63 = arith.constant 1 : index
    %102 = memref.load %arg4[%c5_62, %c1_63] : memref<8x4xf32, #tpu.memory_space<smem>>
    %103 = vector.broadcast %102 : f32 to vector<1x64xf32>
    %104 = arith.mulf %103, %6 : vector<1x64xf32>
    %105 = arith.addf %101, %104 : vector<1x64xf32>
    %c5_64 = arith.constant 5 : index
    %c2_65 = arith.constant 2 : index
    %106 = memref.load %arg4[%c5_64, %c2_65] : memref<8x4xf32, #tpu.memory_space<smem>>
    %107 = vector.broadcast %106 : f32 to vector<1x64xf32>
    %108 = arith.mulf %107, %7 : vector<1x64xf32>
    %109 = arith.addf %105, %108 : vector<1x64xf32>
    %c5_66 = arith.constant 5 : index
    %c3_67 = arith.constant 3 : index
    %110 = memref.load %arg4[%c5_66, %c3_67] : memref<8x4xf32, #tpu.memory_space<smem>>
    %111 = vector.broadcast %110 : f32 to vector<1x64xf32>
    %112 = arith.mulf %111, %8 : vector<1x64xf32>
    %113 = arith.addf %109, %112 : vector<1x64xf32>
    %c0_68 = arith.constant 0 : index
    %c5_69 = arith.constant 5 : index
    %c0_70 = arith.constant 0 : index
    %c0_71 = arith.constant 0 : index
    %114 = vector.load %arg5[%c0_68, %c5_69, %c0_70, %c0_71] : memref<1x8x1x64xf32, #tpu.memory_space<vmem>>, vector<1x1x1x64xf32>
    %115 = vector.shape_cast %114 : vector<1x1x1x64xf32> to vector<1x64xf32>
    %116 = vector.shape_cast %113 : vector<1x64xf32> to vector<1x1x1x64xf32>
    tpu.vector_store %arg5[%c0_68, %c5_69, %c0_70, %c0_71], %116 {strides = array<i32>} : memref<1x8x1x64xf32, #tpu.memory_space<vmem>>, vector<1x1x1x64xf32>,
    %c6 = arith.constant 6 : index
    %c0_72 = arith.constant 0 : index
    %117 = memref.load %arg4[%c6, %c0_72] : memref<8x4xf32, #tpu.memory_space<smem>>
    %118 = vector.broadcast %117 : f32 to vector<1x64xf32>
    %119 = arith.mulf %118, %5 : vector<1x64xf32>
    %c6_73 = arith.constant 6 : index
    %c1_74 = arith.constant 1 : index
    %120 = memref.load %arg4[%c6_73, %c1_74] : memref<8x4xf32, #tpu.memory_space<smem>>
    %121 = vector.broadcast %120 : f32 to vector<1x64xf32>
    %122 = arith.mulf %121, %6 : vector<1x64xf32>
    %123 = arith.addf %119, %122 : vector<1x64xf32>
    %c6_75 = arith.constant 6 : index
    %c2_76 = arith.constant 2 : index
    %124 = memref.load %arg4[%c6_75, %c2_76] : memref<8x4xf32, #tpu.memory_space<smem>>
    %125 = vector.broadcast %124 : f32 to vector<1x64xf32>
    %126 = arith.mulf %125, %7 : vector<1x64xf32>
    %127 = arith.addf %123, %126 : vector<1x64xf32>
    %c6_77 = arith.constant 6 : index
    %c3_78 = arith.constant 3 : index
    %128 = memref.load %arg4[%c6_77, %c3_78] : memref<8x4xf32, #tpu.memory_space<smem>>
    %129 = vector.broadcast %128 : f32 to vector<1x64xf32>
    %130 = arith.mulf %129, %8 : vector<1x64xf32>
    %131 = arith.addf %127, %130 : vector<1x64xf32>
    %c0_79 = arith.constant 0 : index
    %c6_80 = arith.constant 6 : index
    %c0_81 = arith.constant 0 : index
    %c0_82 = arith.constant 0 : index
    %132 = vector.load %arg5[%c0_79, %c6_80, %c0_81, %c0_82] : memref<1x8x1x64xf32, #tpu.memory_space<vmem>>, vector<1x1x1x64xf32>
    %133 = vector.shape_cast %132 : vector<1x1x1x64xf32> to vector<1x64xf32>
    %134 = vector.shape_cast %131 : vector<1x64xf32> to vector<1x1x1x64xf32>
    tpu.vector_store %arg5[%c0_79, %c6_80, %c0_81, %c0_82], %134 {strides = array<i32>} : memref<1x8x1x64xf32, #tpu.memory_space<vmem>>, vector<1x1x1x64xf32>,
    %c7 = arith.constant 7 : index
    %c0_83 = arith.constant 0 : index
    %135 = memref.load %arg4[%c7, %c0_83] : memref<8x4xf32, #tpu.memory_space<smem>>
    %136 = vector.broadcast %135 : f32 to vector<1x64xf32>
    %137 = arith.mulf %136, %5 : vector<1x64xf32>
    %c7_84 = arith.constant 7 : index
    %c1_85 = arith.constant 1 : index
    %138 = memref.load %arg4[%c7_84, %c1_85] : memref<8x4xf32, #tpu.memory_space<smem>>
    %139 = vector.broadcast %138 : f32 to vector<1x64xf32>
    %140 = arith.mulf %139, %6 : vector<1x64xf32>
    %141 = arith.addf %137, %140 : vector<1x64xf32>
    %c7_86 = arith.constant 7 : index
    %c2_87 = arith.constant 2 : index
    %142 = memref.load %arg4[%c7_86, %c2_87] : memref<8x4xf32, #tpu.memory_space<smem>>
    %143 = vector.broadcast %142 : f32 to vector<1x64xf32>
    %144 = arith.mulf %143, %7 : vector<1x64xf32>
    %145 = arith.addf %141, %144 : vector<1x64xf32>
    %c7_88 = arith.constant 7 : index
    %c3_89 = arith.constant 3 : index
    %146 = memref.load %arg4[%c7_88, %c3_89] : memref<8x4xf32, #tpu.memory_space<smem>>
    %147 = vector.broadcast %146 : f32 to vector<1x64xf32>
    %148 = arith.mulf %147, %8 : vector<1x64xf32>
    %149 = arith.addf %145, %148 : vector<1x64xf32>
    %c0_90 = arith.constant 0 : index
    %c7_91 = arith.constant 7 : index
    %c0_92 = arith.constant 0 : index
    %c0_93 = arith.constant 0 : index
    %150 = vector.load %arg5[%c0_90, %c7_91, %c0_92, %c0_93] : memref<1x8x1x64xf32, #tpu.memory_space<vmem>>, vector<1x1x1x64xf32>
    %151 = vector.shape_cast %150 : vector<1x1x1x64xf32> to vector<1x64xf32>
    %152 = vector.shape_cast %149 : vector<1x64xf32> to vector<1x1x1x64xf32>
    tpu.vector_store %arg5[%c0_90, %c7_91, %c0_92, %c0_93], %152 {strides = array<i32>} : memref<1x8x1x64xf32, #tpu.memory_space<vmem>>, vector<1x1x1x64xf32>,
    return
  }
  func.func @transform_0(%arg0: i32, %arg1: i32) -> (i32, i32, i32, i32) {
    %c0_i32 = arith.constant 0 : i32
    %c0_i32_0 = arith.constant 0 : i32
    %c0_i32_1 = arith.constant 0 : i32
    return %arg0, %c0_i32, %arg1, %c0_i32_0 : i32, i32, i32, i32
  }
  func.func @transform_1(%arg0: i32, %arg1: i32) -> (i32, i32) {
    %c0_i32 = arith.constant 0 : i32
    %c0_i32_0 = arith.constant 0 : i32
    %c0_i32_1 = arith.constant 0 : i32
    return %c0_i32, %c0_i32_0 : i32, i32
  }
  func.func @transform_2(%arg0: i32, %arg1: i32) -> (i32, i32) {
    %c0_i32 = arith.constant 0 : i32
    %c0_i32_0 = arith.constant 0 : i32
    %c0_i32_1 = arith.constant 0 : i32
    return %c0_i32, %c0_i32_0 : i32, i32
  }
  func.func @transform_3(%arg0: i32, %arg1: i32) -> (i32, i32, i32, i32) {
    %c0_i32 = arith.constant 0 : i32
    %c0_i32_0 = arith.constant 0 : i32
    %c0_i32_1 = arith.constant 0 : i32
    return %arg0, %c0_i32, %arg1, %c0_i32_0 : i32, i32, i32, i32
  }
}

</mosaic_0001>

<llo_original>
// kernel: tpu_custom_call.1
$region0: #{tpu_custom_call.1}
  #allocation0 [shape = 'u32[]', space=smem, size = 0x4, offset = 0x4, fixed_abs, tag = 'smem constant byte address 0x4 - core index']
  #allocation1 [shape = 'u32[144,128]{1,0:T(1,128)}', space=vmem, size = 0x12000, scoped, tag = 'internal scratch']
  %s0 = inlined_call_operand.vmem [shape: f32[2,4,1,256], index: 0, kind: input, shape index: {}]
  %s1 = inlined_call_operand.vmem [shape: f32[256,64], index: 1, kind: input, shape index: {}]
  %s2 = inlined_call_operand.vmem [shape: f32[8,4], index: 2, kind: input, shape index: {}]
  %s3 = inlined_call_operand.hbm [shape: f32[2,8,1,64], index: 3, kind: output, shape index: {}]
  %s4 = sld [smem:[#allocation0]]
  $region49: #{tpu_custom_call.1} parent=0
    _
  %s6 = ssub.s32 1, %s4
  %s7 = scalar_select 0, %s6, %s4
  $region1: #{tpu_custom_call.1} parent=0
    #allocation2 [shape = 'u8[4096]{0}', space=smem, size = 0x1000, scoped, tag = 'input window, operand 2, single buffered']
    #allocation3 [shape = 's32[2]{0}', space=sflag, size = 0x8, scoped, tag = 'scoped memory for tpu_custom_call.1']
    #allocation4 [shape = 's32[2]{0}', space=sflag, size = 0x8, scoped, tag = 'scoped memory for tpu_custom_call.1']
    #allocation5 [shape = 'u8[8192]{0}', space=vmem, size = 0x2000, scoped, tag = 'output window, operand 0']
    %8 = vsyncpa [#allocation4], 0
    %9 = vsyncpa [#allocation3], 0
    %s10 = scalar_lea.sflag [#allocation3], 1
    %11 = vsyncpa %s10, 0
    loop: start=0, step=1, limit=4
    $region2: #{tpu_custom_call.1} parent=1 // loop_pre_header
      _
    $region3: #{tpu_custom_call.1} parent=1 // loop_header
      %s13 = sphi 0, %s17
      %p14 = scmp.ge.s32.totalorder %s13, 4
      %s20 = sphi 0, %s32
      %s21 = sphi 0, %s28
      %s22 = sphi 0, %s20
      %s23 = sphi 0, %s21
      %s24 = sphi 0, %s22
      %s25 = sphi 0, %s23
      %s37 = sphi 0, %s39
      %s40 = sphi 0, %s37
      %s41 = sphi 0, %s40
      %s57 = sphi 0, %s41
      %s61 = sphi 0, %s61
      %s63 = sphi 0, %s61
      %s64 = sphi 0, %s63
      %s78 = sphi 0, %s64
      %s82 = sphi 0, %s82
      %s84 = sphi 0, %s82
      %s85 = sphi 0, %s84
      %s99 = sphi 0, %s85
      %s107 = sphi 0, %s109
      %s110 = sphi 0, %s107
      %s111 = sphi 0, %s110
      %s127 = sphi 0, %s111
    $region4: #{tpu_custom_call.1} parent=1 // loop_header_branch
      %16 = sbr.rel (%p14) target = $region8
    $region5: #{tpu_custom_call.1} parent=1 // loop_body
      %s18 = ssub.s32 %s13, 1
      %s19 = ssub.s32 %s13, 2
      %s26 = sadd.s32 1, %s21
      %p27 = scmp.ge.s32.totalorder %s26, 1
      %s28 = scalar_select %p27, 0, %s26
      %s29 = sadd.s32 1, %s20
      %s30 = scalar_select %p27, %s29, %s20
      %p31 = scmp.ge.s32.totalorder %s30, 2
      %s32 = scalar_select %p31, 0, %s30
      %s33 = ssub.s32 %s20, %s32
      %s34 = ssub.s32 %s21, %s28
      %s35 = sor.u32 %s33, %s34
      %p36 = scmp.eq.s32.totalorder %s35, 0
      %s38 = sadd.s32 %s37, 1
      %s39 = scalar_select %p36, %s37, %s38
      %p42 = pneg %p36
      %p43 = scmp.eq.s32.totalorder %s13, 1
      %p44 = por %p42, %p43
      %p45 = scmp.ne.s32.totalorder %s37, %s40
      %p46 = scmp.eq.s32.totalorder %s13, 0
      %p47 = por %p45, %p46
      %p48 = scmp.ne.s32.totalorder %s37, %s40
      %p49 = scmp.eq.s32.totalorder %s18, 1
      %p50 = por %p48, %p49
      %p51 = scmp.ne.s32.totalorder %s40, %s41
      %p52 = scmp.eq.s32.totalorder %s18, 0
      %p53 = por %p51, %p52
      %p54 = scmp.ne.s32.totalorder %s40, %s41
      %p55 = scmp.eq.s32.totalorder %s19, 1
      %p56 = por %p54, %p55
      %p58 = scmp.ne.s32.totalorder %s41, %s57
      %p59 = scmp.eq.s32.totalorder %s19, 0
      %p60 = por %p58, %p59
      %s62 = sadd.s32 %s61, 1
      %p65 = scmp.eq.s32.totalorder %s13, 1
      %p66 = scmp.ne.s32.totalorder %s61, %s63
      %p67 = scmp.eq.s32.totalorder %s13, 0
      %p68 = por %p66, %p67
      %p69 = scmp.ne.s32.totalorder %s61, %s63
      %p70 = scmp.eq.s32.totalorder %s18, 1
      %p71 = por %p69, %p70
      %p72 = scmp.ne.s32.totalorder %s63, %s64
      %p73 = scmp.eq.s32.totalorder %s18, 0
      %p74 = por %p72, %p73
      %p75 = scmp.ne.s32.totalorder %s63, %s64
      %p76 = scmp.eq.s32.totalorder %s19, 1
      %p77 = por %p75, %p76
      %p79 = scmp.ne.s32.totalorder %s64, %s78
      %p80 = scmp.eq.s32.totalorder %s19, 0
      %p81 = por %p79, %p80
      %s83 = sadd.s32 %s82, 1
      %p86 = scmp.eq.s32.totalorder %s13, 1
      %p87 = scmp.ne.s32.totalorder %s82, %s84
      %p88 = scmp.eq.s32.totalorder %s13, 0
      %p89 = por %p87, %p88
      %p90 = scmp.ne.s32.totalorder %s82, %s84
      %p91 = scmp.eq.s32.totalorder %s18, 1
      %p92 = por %p90, %p91
      %p93 = scmp.ne.s32.totalorder %s84, %s85
      %p94 = scmp.eq.s32.totalorder %s18, 0
      %p95 = por %p93, %p94
      %p96 = scmp.ne.s32.totalorder %s84, %s85
      %p97 = scmp.eq.s32.totalorder %s19, 1
      %p98 = por %p96, %p97
      %p100 = scmp.ne.s32.totalorder %s85, %s99
      %p101 = scmp.eq.s32.totalorder %s19, 0
      %p102 = por %p100, %p101
      %s103 = ssub.s32 %s20, %s32
      %s104 = ssub.s32 %s21, %s28
      %s105 = sor.u32 %s103, %s104
      %p106 = scmp.eq.s32.totalorder %s105, 0
      %s108 = sadd.s32 %s107, 1
      %s109 = scalar_select %p106, %s107, %s108
      %p112 = pneg %p106
      %p113 = scmp.eq.s32.totalorder %s13, 1
      %p114 = por %p112, %p113
      %p115 = scmp.ne.s32.totalorder %s107, %s110
      %p116 = scmp.eq.s32.totalorder %s13, 0
      %p117 = por %p115, %p116
      %p118 = scmp.ne.s32.totalorder %s107, %s110
      %p119 = scmp.eq.s32.totalorder %s18, 1
      %p120 = por %p118, %p119
      %p121 = scmp.ne.s32.totalorder %s110, %s111
      %p122 = scmp.eq.s32.totalorder %s18, 0
      %p123 = por %p121, %p122
      %p124 = scmp.ne.s32.totalorder %s110, %s111
      %p125 = scmp.eq.s32.totalorder %s19, 1
      %p126 = por %p124, %p125
      %p128 = scmp.ne.s32.totalorder %s111, %s127
      %p129 = scmp.eq.s32.totalorder %s19, 0
      %p130 = por %p128, %p129
      %p131 = scmp.le.s32.totalorder 1, %s13
      %p132 = scmp.lt.s32.totalorder %s13, 3
      %p133 = pnand %p131, %p132
      %p134 = pneg %p133
      // Predicated region
      $region9: #{tpu_custom_call.1} parent=5 // pred_check
        _
      $region10: #{tpu_custom_call.1} parent=5 // pred_check_branch
        %136 = sbr.rel (%p133) target = $region12
      $region11: #{tpu_custom_call.1} parent=5 // pred_region
        %s137 = ssub.s32 %s13, 1
        // Predicated region
        $region13: #{tpu_custom_call.1} parent=11 // pred_check
          %p138 = pneg %p74
        $region14: #{tpu_custom_call.1} parent=11 // pred_check_branch
          %140 = sbr.rel (%p138) target = $region16
        $region15: #{tpu_custom_call.1} parent=11 // pred_region
          _
        $region16: #{tpu_custom_call.1} parent=11 // pred_fallthru
          _
        // Predicated region
        $region17: #{tpu_custom_call.1} parent=11 // pred_check
          %p141 = pneg %p95
        $region18: #{tpu_custom_call.1} parent=11 // pred_check_branch
          %143 = sbr.rel (%p141) target = $region20
        $region19: #{tpu_custom_call.1} parent=11 // pred_region
          %s145 = ssub.s32 128, 128
          %146 = vsyncadd [#allocation4], %s145
          %s148 = sshll.u32 %s2, 4
          %s149 = int_to_ptr.vmem [resolvable:$true] %s148
          %151 = dma.vmem_to_smem %s149, 128, [#allocation2], [#allocation4]
        $region20: #{tpu_custom_call.1} parent=11 // pred_fallthru
          _
      $region12: #{tpu_custom_call.1} parent=5 // pred_fallthru
        _
      %p152 = scmp.lt.s32.totalorder %s13, 2
      // Predicated region
      $region21: #{tpu_custom_call.1} parent=5 // pred_check
        %p153 = pneg %p152
      $region22: #{tpu_custom_call.1} parent=5 // pred_check_branch
        %155 = sbr.rel (%p153) target = $region24
      $region23: #{tpu_custom_call.1} parent=5 // pred_region
        // Predicated region
        $region25: #{tpu_custom_call.1} parent=23 // pred_check
          %p156 = pneg %p47
        $region26: #{tpu_custom_call.1} parent=23 // pred_check_branch
          %158 = sbr.rel (%p156) target = $region28
        $region27: #{tpu_custom_call.1} parent=23 // pred_region
          %p159 = scmp.lt.s32.totalorder %s20, 1
          %s160 = scalar_select %p159, %s20, 1
          %p161 = scmp.lt.s32.totalorder %s21, 0
          %s162 = scalar_select %p161, %s21, 0
          %s163 = smul.addr %s162, 2
          %s164 = smul.addr %s160, 8
          %s165 = sadd.s32 %s163, %s164
          %s166 = scalar_lea.vmem %s0, %s165
        $region28: #{tpu_custom_call.1} parent=23 // pred_fallthru
          _
      $region24: #{tpu_custom_call.1} parent=5 // pred_fallthru
        _
      %p167 = scmp.le.s32.totalorder 1, %s13
      %p168 = scmp.lt.s32.totalorder %s13, 3
      %p169 = pnand %p167, %p168
      %p170 = pneg %p169
      // Predicated region
      $region29: #{tpu_custom_call.1} parent=5 // pred_check
        _
      $region30: #{tpu_custom_call.1} parent=5 // pred_check_branch
        %172 = sbr.rel (%p169) target = $region32
      $region31: #{tpu_custom_call.1} parent=5 // pred_region
        %s173 = ssub.s32 %s13, 1
        // Predicated region
        $region33: #{tpu_custom_call.1} parent=31 // pred_check
          %p174 = pneg %p95
        $region34: #{tpu_custom_call.1} parent=31 // pred_check_branch
          %176 = sbr.rel (%p174) target = $region36
        $region35: #{tpu_custom_call.1} parent=31 // pred_region
          %177 = dma.done [#allocation4], 128
        $region36: #{tpu_custom_call.1} parent=31 // pred_fallthru
          _
        %178 = sfence
        %p179 = scmp.lt.s32.totalorder %s22, 1
        %s180 = scalar_select %p179, %s22, 1
        %p181 = scmp.lt.s32.totalorder %s23, 0
        %s182 = scalar_select %p181, %s23, 0
        %s183 = smul.addr %s182, 2
        %s184 = smul.addr %s180, 8
        %s185 = sadd.s32 %s183, %s184
        %s186 = scalar_lea.vmem %s0, %s185
        %p187 = pneg %p53
        %p188 = pneg %p50
        %p189 = pneg %p74
        %p190 = pneg %p71
        %p191 = pneg %p95
        %p192 = pneg %p92
        %p193 = pneg %p123
        %p194 = pneg %p120
        %s195 = sand.u32 %s110, 1
        %s196 = scalar_lea.sflag [#allocation3], %s195
        %s197 = sand.u32 %s110, 1
        %s198 = smul.addr %s197, 8
        %s199 = scalar_lea.vmem [#allocation5], %s198
        %p200 = scmp.lt.s32.totalorder %s22, 1
        %s201 = scalar_select %p200, %s22, 1
        %p202 = scmp.lt.s32.totalorder %s23, 0
        %s203 = scalar_select %p202, %s23, 0
        %s204 = smul.addr %s203, 2
        %s205 = smul.addr %s201, 8
        %s206 = sadd.s32 %s204, %s205
        %s207 = scalar_lea.vmem %s0, %s206
        %v208 = vld [vmem:[%s1] sm:$0xff]
        %v209 = vld [vmem:[%s1 + $0x8] sm:$0xff]
        %v210 = vld [vmem:[%s1 + $0x10] sm:$0xff]
        %v211 = vld [vmem:[%s1 + $0x18] sm:$0xff]
        %v212 = vld [vmem:[%s1 + $0x20] sm:$0xff]
        %v213 = vld [vmem:[%s1 + $0x28] sm:$0xff]
        %v214 = vld [vmem:[%s1 + $0x30] sm:$0xff]
        %v215 = vld [vmem:[%s1 + $0x38] sm:$0xff]
        %v216 = vld [vmem:[%s1 + $0x40] sm:$0xff]
        %v217 = vld [vmem:[%s1 + $0x48] sm:$0xff]
        %v218 = vld [vmem:[%s1 + $0x50] sm:$0xff]
        %v219 = vld [vmem:[%s1 + $0x58] sm:$0xff]
        %v220 = vld [vmem:[%s1 + $0x60] sm:$0xff]
        %v221 = vld [vmem:[%s1 + $0x68] sm:$0xff]
        %v222 = vld [vmem:[%s1 + $0x70] sm:$0xff]
        %v223 = vld [vmem:[%s1 + $0x78] sm:$0xff]
        %v224 = vld [vmem:[%s1 + $0x80] sm:$0xff]
        %v225 = vld [vmem:[%s1 + $0x88] sm:$0xff]
        %v226 = vld [vmem:[%s1 + $0x90] sm:$0xff]
        %v227 = vld [vmem:[%s1 + $0x98] sm:$0xff]
        %v228 = vld [vmem:[%s1 + $0xa0] sm:$0xff]
        %v229 = vld [vmem:[%s1 + $0xa8] sm:$0xff]
        %v230 = vld [vmem:[%s1 + $0xb0] sm:$0xff]
        %v231 = vld [vmem:[%s1 + $0xb8] sm:$0xff]
        %v232 = vld [vmem:[%s1 + $0xc0] sm:$0xff]
        %v233 = vld [vmem:[%s1 + $0xc8] sm:$0xff]
        %v234 = vld [vmem:[%s1 + $0xd0] sm:$0xff]
        %v235 = vld [vmem:[%s1 + $0xd8] sm:$0xff]
        %v236 = vld [vmem:[%s1 + $0xe0] sm:$0xff]
        %v237 = vld [vmem:[%s1 + $0xe8] sm:$0xff]
        %v238 = vld [vmem:[%s1 + $0xf0] sm:$0xff]
        %v239 = vld [vmem:[%s1 + $0xf8] sm:$0xff]
        %v240 = vld [vmem:[%s207] sm:$0x3]
        %v241 = vld [vmem:[%s207 + $0x2] sm:$0x3]
        %v242 = vld [vmem:[%s207 + $0x4] sm:$0x3]
        %v243 = vld [vmem:[%s207 + $0x6] sm:$0x3]
        %v248 = vcombine.low %v240, %v241
        %v249 = vcombine.low %v242, %v243
        %v251 = vunpack.c.l.s4 1966171168
        %v252 = vunpack.c.0.s8 %v251
        %v253 = vlaneseq
        %v254 = vshrl.u32 %v253, 7
        %v255 = vsub.s32 %v252, %v254
        %v256 = vrot.slane %v248, %v255
        %v258 = vunpack.c.l.s4 1966171168
        %v259 = vunpack.c.0.s8 %v258
        %v260 = vlaneseq
        %v261 = vshrl.u32 %v260, 7
        %v262 = vsub.s32 %v259, %v261
        %v263 = vrot.slane %v249, %v262
        %v264 = vcombine.low %v256, %v263
        %v265 = vcombine.high %v256, %v263
        %v267 = vunpack.c.l.s4 1966171168
        %v268 = vunpack.c.0.s8 %v267
        %v269 = vlaneseq
        %v270 = vshrl.u32 %v269, 7
        %v271 = vsub.s32 %v268, %v270
        %v272 = vrot.slane %v264, %v271
        %v274 = vunpack.c.l.s4 1966171168
        %v275 = vunpack.c.0.s8 %v274
        %v276 = vlaneseq
        %v277 = vshrl.u32 %v276, 7
        %v278 = vsub.s32 %v275, %v277
        %v279 = vrot.slane %v265, %v278
        %282 = vmatprep.subr.mxu0 0.0
        %283 = vmatpush1.msra.mxu0 %v208
        %284 = vmatprep.subr.mxu0 0.0
        %285 = vmatpush1.msra.mxu0 %v209
        %286 = vmatprep.subr.mxu0 0.0
        %287 = vmatpush1.msra.mxu0 %v210
        %288 = vmatprep.subr.mxu0 0.0
        %289 = vmatpush1.msra.mxu0 %v211
        %290 = vmatprep.subr.mxu0 0.0
        %291 = vmatpush1.msra.mxu0 %v212
        %292 = vmatprep.subr.mxu0 0.0
        %293 = vmatpush1.msra.mxu0 %v213
        %294 = vmatprep.subr.mxu0 0.0
        %295 = vmatpush1.msra.mxu0 %v214
        %296 = vmatprep.subr.mxu0 0.0
        %297 = vmatpush1.msra.mxu0 %v215
        %298 = vmatprep.subr.mxu0 0.0
        %299 = vmatpush1.msra.mxu0 %v216
        %300 = vmatprep.subr.mxu0 0.0
        %301 = vmatpush1.msra.mxu0 %v217
        %302 = vmatprep.subr.mxu0 0.0
        %303 = vmatpush1.msra.mxu0 %v218
        %304 = vmatprep.subr.mxu0 0.0
        %305 = vmatpush1.msra.mxu0 %v219
        %306 = vmatprep.subr.mxu0 0.0
        %307 = vmatpush1.msra.mxu0 %v220
        %308 = vmatprep.subr.mxu0 0.0
        %309 = vmatpush1.msra.mxu0 %v221
        %310 = vmatprep.subr.mxu0 0.0
        %311 = vmatpush1.msra.mxu0 %v222
        %312 = vmatprep.subr.mxu0 0.0
        %313 = vmatpush1.msra.mxu0 %v223
        %314 = vmatprep.subr.mxu0 0.0
        %315 = vmatpush1.msra.mxu0 %v224
        %316 = vmatprep.subr.mxu0 0.0
        %317 = vmatpush1.msra.mxu0 %v225
        %318 = vmatprep.subr.mxu0 0.0
        %319 = vmatpush1.msra.mxu0 %v226
        %320 = vmatprep.subr.mxu0 0.0
        %321 = vmatpush1.msra.mxu0 %v227
        %322 = vmatprep.subr.mxu0 0.0
        %323 = vmatpush1.msra.mxu0 %v228
        %324 = vmatprep.subr.mxu0 0.0
        %325 = vmatpush1.msra.mxu0 %v229
        %326 = vmatprep.subr.mxu0 0.0
        %327 = vmatpush1.msra.mxu0 %v230
        %328 = vmatprep.subr.mxu0 0.0
        %329 = vmatpush1.msra.mxu0 %v231
        %330 = vmatprep.subr.mxu0 0.0
        %331 = vmatpush1.msra.mxu0 %v232
        %332 = vmatprep.subr.mxu0 0.0
        %333 = vmatpush1.msra.mxu0 %v233
        %334 = vmatprep.subr.mxu0 0.0
        %335 = vmatpush1.msra.mxu0 %v234
        %336 = vmatprep.subr.mxu0 0.0
        %337 = vmatpush1.msra.mxu0 %v235
        %338 = vmatprep.subr.mxu0 0.0
        %339 = vmatpush1.msra.mxu0 %v236
        %340 = vmatprep.subr.mxu0 0.0
        %341 = vmatpush1.msra.mxu0 %v237
        %342 = vmatprep.subr.mxu0 0.0
        %343 = vmatpush1.msra.mxu0 %v238
        %344 = vmatprep.subr.mxu0 0.0
        %345 = vmatpush1.msra.mxu0 %v239
        %346 = vmatprep.mubr.f32.mxu0 %v279
        %347 = vmatmul.mubr.f32.gmra.mrb[0].mxu0 %v272
        %v348 = vpop.f32.mrb[0].mxu0
        %v349 = vadd.f32 0.0, %v348
        %v350 = vpop.f32.mrb[0].mxu0
        %351 = vdwg.mxu0
        %s352 = sld [smem:[#allocation2]]
        %v353 = vstv %s352
        %v354 = vmul.f32 %v353, %v349
        %s355 = sld [smem:[#allocation2 + $0x1]]
        %v356 = vstv %s355
        %v357 = vmul.f32 %v356, %v349
        %v359 = vrot.slane %v357, 1
        %v361 = vadd.f32 %v354, %v359
        %s362 = sld [smem:[#allocation2 + $0x2]]
        %v363 = vstv %s362
        %v364 = vmul.f32 %v363, %v349
        %v366 = vrot.slane %v364, 2
        %v368 = vadd.f32 %v361, %v366
        %s369 = sld [smem:[#allocation2 + $0x3]]
        %v370 = vstv %s369
        %v371 = vmul.f32 %v370, %v349
        %v373 = vrot.slane %v371, 3
        %v375 = vadd.f32 %v368, %v373
        %vm376 = vcmask 516096
        %377 = vst.msk [vmem:[%s199] sm:$0x1] %vm376, %v375
        %s378 = sld [smem:[#allocation2 + $0x80]]
        %v379 = vstv %s378
        %v380 = vmul.f32 %v379, %v349
        %s381 = sld [smem:[#allocation2 + $0x81]]
        %v382 = vstv %s381
        %v383 = vmul.f32 %v382, %v349
        %v385 = vrot.slane %v383, 1
        %v387 = vadd.f32 %v380, %v385
        %s388 = sld [smem:[#allocation2 + $0x82]]
        %v389 = vstv %s388
        %v390 = vmul.f32 %v389, %v349
        %v392 = vrot.slane %v390, 2
        %v394 = vadd.f32 %v387, %v392
        %s395 = sld [smem:[#allocation2 + $0x83]]
        %v396 = vstv %s395
        %v397 = vmul.f32 %v396, %v349
        %v399 = vrot.slane %v397, 3
        %v401 = vadd.f32 %v394, %v399
        %s402 = scalar_lea.vmem %s199, 1 [#allocation5]
        %403 = vst.msk [vmem:[%s402] sm:$0x1] %vm376, %v401
        %s404 = sld [smem:[#allocation2 + $0x100]]
        %v405 = vstv %s404
        %v406 = vmul.f32 %v405, %v349
        %s407 = sld [smem:[#allocation2 + $0x101]]
        %v408 = vstv %s407
        %v409 = vmul.f32 %v408, %v349
        %v411 = vrot.slane %v409, 1
        %v413 = vadd.f32 %v406, %v411
        %s414 = sld [smem:[#allocation2 + $0x102]]
        %v415 = vstv %s414
        %v416 = vmul.f32 %v415, %v349
        %v418 = vrot.slane %v416, 2
        %v420 = vadd.f32 %v413, %v418
        %s421 = sld [smem:[#allocation2 + $0x103]]
        %v422 = vstv %s421
        %v423 = vmul.f32 %v422, %v349
        %v425 = vrot.slane %v423, 3
        %v427 = vadd.f32 %v420, %v425
        %s428 = scalar_lea.vmem %s199, 2 [#allocation5]
        %429 = vst.msk [vmem:[%s428] sm:$0x1] %vm376, %v427
        %s430 = sld [smem:[#allocation2 + $0x180]]
        %v431 = vstv %s430
        %v432 = vmul.f32 %v431, %v349
        %s433 = sld [smem:[#allocation2 + $0x181]]
        %v434 = vstv %s433
        %v435 = vmul.f32 %v434, %v349
        %v437 = vrot.slane %v435, 1
        %v439 = vadd.f32 %v432, %v437
        %s440 = sld [smem:[#allocation2 + $0x182]]
        %v441 = vstv %s440
        %v442 = vmul.f32 %v441, %v349
        %v444 = vrot.slane %v442, 2
        %v446 = vadd.f32 %v439, %v444
        %s447 = sld [smem:[#allocation2 + $0x183]]
        %v448 = vstv %s447
        %v449 = vmul.f32 %v448, %v349
        %v451 = vrot.slane %v449, 3
        %v453 = vadd.f32 %v446, %v451
        %s454 = scalar_lea.vmem %s199, 3 [#allocation5]
        %455 = vst.msk [vmem:[%s454] sm:$0x1] %vm376, %v453
        %s456 = sld [smem:[#allocation2 + $0x200]]
        %v457 = vstv %s456
        %v458 = vmul.f32 %v457, %v349
        %s459 = sld [smem:[#allocation2 + $0x201]]
        %v460 = vstv %s459
        %v461 = vmul.f32 %v460, %v349
        %v463 = vrot.slane %v461, 1
        %v465 = vadd.f32 %v458, %v463
        %s466 = sld [smem:[#allocation2 + $0x202]]
        %v467 = vstv %s466
        %v468 = vmul.f32 %v467, %v349
        %v470 = vrot.slane %v468, 2
        %v472 = vadd.f32 %v465, %v470
        %s473 = sld [smem:[#allocation2 + $0x203]]
        %v474 = vstv %s473
        %v475 = vmul.f32 %v474, %v349
        %v477 = vrot.slane %v475, 3
        %v479 = vadd.f32 %v472, %v477
        %s480 = scalar_lea.vmem %s199, 4 [#allocation5]
        %481 = vst.msk [vmem:[%s480] sm:$0x1] %vm376, %v479
        %s482 = sld [smem:[#allocation2 + $0x280]]
        %v483 = vstv %s482
        %v484 = vmul.f32 %v483, %v349
        %s485 = sld [smem:[#allocation2 + $0x281]]
        %v486 = vstv %s485
        %v487 = vmul.f32 %v486, %v349
        %v489 = vrot.slane %v487, 1
        %v491 = vadd.f32 %v484, %v489
        %s492 = sld [smem:[#allocation2 + $0x282]]
        %v493 = vstv %s492
        %v494 = vmul.f32 %v493, %v349
        %v496 = vrot.slane %v494, 2
        %v498 = vadd.f32 %v491, %v496
        %s499 = sld [smem:[#allocation2 + $0x283]]
        %v500 = vstv %s499
        %v501 = vmul.f32 %v500, %v349
        %v503 = vrot.slane %v501, 3
        %v505 = vadd.f32 %v498, %v503
        %s506 = scalar_lea.vmem %s199, 5 [#allocation5]
        %507 = vst.msk [vmem:[%s506] sm:$0x1] %vm376, %v505
        %s508 = sld [smem:[#allocation2 + $0x300]]
        %v509 = vstv %s508
        %v510 = vmul.f32 %v509, %v349
        %s511 = sld [smem:[#allocation2 + $0x301]]
        %v512 = vstv %s511
        %v513 = vmul.f32 %v512, %v349
        %v515 = vrot.slane %v513, 1
        %v517 = vadd.f32 %v510, %v515
        %s518 = sld [smem:[#allocation2 + $0x302]]
        %v519 = vstv %s518
        %v520 = vmul.f32 %v519, %v349
        %v522 = vrot.slane %v520, 2
        %v524 = vadd.f32 %v517, %v522
        %s525 = sld [smem:[#allocation2 + $0x303]]
        %v526 = vstv %s525
        %v527 = vmul.f32 %v526, %v349
        %v529 = vrot.slane %v527, 3
        %v531 = vadd.f32 %v524, %v529
        %s532 = scalar_lea.vmem %s199, 6 [#allocation5]
        %533 = vst.msk [vmem:[%s532] sm:$0x1] %vm376, %v531
        %s534 = sld [smem:[#allocation2 + $0x380]]
        %v535 = vstv %s534
        %v536 = vmul.f32 %v535, %v349
        %s537 = sld [smem:[#allocation2 + $0x381]]
        %v538 = vstv %s537
        %v539 = vmul.f32 %v538, %v349
        %v541 = vrot.slane %v539, 1
        %v543 = vadd.f32 %v536, %v541
        %s544 = sld [smem:[#allocation2 + $0x382]]
        %v545 = vstv %s544
        %v546 = vmul.f32 %v545, %v349
        %v548 = vrot.slane %v546, 2
        %v550 = vadd.f32 %v543, %v548
        %s551 = sld [smem:[#allocation2 + $0x383]]
        %v552 = vstv %s551
        %v553 = vmul.f32 %v552, %v349
        %v555 = vrot.slane %v553, 3
        %v557 = vadd.f32 %v550, %v555
        %s558 = scalar_lea.vmem %s199, 7 [#allocation5]
        %559 = vst.msk [vmem:[%s558] sm:$0x1] %vm376, %v557
        %s560 = sand.u32 %s110, 1
        %s561 = scalar_lea.sflag [#allocation3], %s560
        %s562 = sand.u32 %s110, 1
        %s563 = smul.addr %s562, 8
        %s564 = scalar_lea.vmem [#allocation5], %s563
        // Predicated region
        $region37: #{tpu_custom_call.1} parent=31 // pred_check
          %p565 = pneg %p120
        $region38: #{tpu_custom_call.1} parent=31 // pred_check_branch
          %567 = sbr.rel (%p565) target = $region40
        $region39: #{tpu_custom_call.1} parent=31 // pred_region
          %s569 = ssub.s32 128, 128
          %570 = vsyncadd %s561, %s569
          %s571 = smul.addr %s22, 8
          %s572 = sadd.s32 %s23, %s571
          %s573 = smul.addr %s572, 16
          %s574 = scalar_lea.hbm %s3, %s573
          %s575 = sshll.u32 %s564, 4
          %s576 = int_to_ptr.vmem [resolvable:$true] %s575
          %581 = dma.vmem_to_hbm [thread:$0]  %s576, 128, %s574, %s561, 16, 16, 1
        $region40: #{tpu_custom_call.1} parent=31 // pred_fallthru
          _
      $region32: #{tpu_custom_call.1} parent=5 // pred_fallthru
        _
      %p582 = scmp.le.s32.totalorder 2, %s13
      // Predicated region
      $region41: #{tpu_custom_call.1} parent=5 // pred_check
        %p583 = pneg %p582
      $region42: #{tpu_custom_call.1} parent=5 // pred_check_branch
        %585 = sbr.rel (%p583) target = $region44
      $region43: #{tpu_custom_call.1} parent=5 // pred_region
        %s586 = ssub.s32 %s13, 2
        // Predicated region
        $region45: #{tpu_custom_call.1} parent=43 // pred_check
          %p587 = pneg %p126
        $region46: #{tpu_custom_call.1} parent=43 // pred_check_branch
          %589 = sbr.rel (%p587) target = $region48
        $region47: #{tpu_custom_call.1} parent=43 // pred_region
          %s590 = sand.u32 %s111, 1
          %s591 = scalar_lea.sflag [#allocation3], %s590
          %s592 = sand.u32 %s111, 1
          %s593 = smul.addr %s592, 8
          %s594 = scalar_lea.vmem [#allocation5], %s593
          %595 = dma.done %s591, 128
        $region48: #{tpu_custom_call.1} parent=43 // pred_fallthru
          _
      $region44: #{tpu_custom_call.1} parent=5 // pred_fallthru
        _
    $region6: #{tpu_custom_call.1} parent=1 // loop_footer
      %s17 = sadd.s32 1, %s13
    $region7: #{tpu_custom_call.1} parent=1 // loop_footer_branch
      %12 = sbr.rel target = $region3
    $region8: #{tpu_custom_call.1} parent=1 // loop_exit
      _
    %596 = vsyncpa [#allocation3], 1
    %s597 = scalar_lea.sflag [#allocation3], 1
    %598 = vsyncpa %s597, 1
    %599 = vsyncpa [#allocation4], 1
    %s600 = scalar_lea.sflag [#allocation4], 1
    %601 = vsyncpa %s600, 1

</llo_original>
